<compile_context>
chip_gen: v5e
topology: v5e:2x2
jax: 0.10.0
libtpu: 0.0.40
codegen_flags: <defaults>
</compile_context>

<pallas_src>
import math

import jax
import jax.numpy as jnp
from jax import lax
from jax.experimental import pallas as pl
from jax.experimental.pallas import tpu as pltpu

_LOG2 = math.log(2.0)


def _softplus(x):
    # Numerically stable softplus (matches F.softplus, beta=1, incl. the linear
    # regime). The ShiftedSoftplus -log(2) shift is folded into the following
    # layer's bias in the wrapper, so it does not appear here.
    return jnp.maximum(x, 0.0) + jnp.log1p(jnp.exp(-jnp.abs(x)))


def _make_mlp_kernel(n_layers):
    """Fused kernel: x -> (Linear -> ssp)*(n_layers-1) -> Linear, transposed layout."""

    def kernel(x_ref, *args):
        o_ref = args[-1]
        wb = args[:-1]  # alternating (fan_out, fan_in) weight / (fan_out, 1) bias refs

        w0 = wb[0][...]
        b0 = wb[1][...].astype(jnp.float32)
        # First layer: contract x's channel (last) dim against W0's fan_in dim,
        # producing activations in transposed (channels, rows) layout -- rows on
        # the 128-lane axis -- without any explicit transpose op. Operands stay
        # in their native dtype; accumulation is f32.
        h = lax.dot_general(
            w0, x_ref[...].astype(w0.dtype),
            dimension_numbers=(((1,), (1,)), ((), ())),
            preferred_element_type=jnp.float32) + b0

        for l in range(1, n_layers):
            h = _softplus(h)  # shift already folded into this layer's bias
            w = wb[2 * l][...]
            b = wb[2 * l + 1][...].astype(jnp.float32)
            h = jnp.dot(w, h.astype(w.dtype),
                        preferred_element_type=jnp.float32) + b

        o_ref[...] = h.astype(o_ref.dtype)  # lane-dense (out_c, tm) store

    return kernel


def _round_up(v, m):
    return (v + m - 1) // m * m


def _padded_bytes(rows, cols, itemsize):
    # VMEM footprint of a 2-D array: sublanes padded to 8, lanes padded to 128.
    return _round_up(max(rows, 1), 8) * _round_up(max(cols, 1), 128) * itemsize


def mlp_forward(x, params, *, max_tile_m=8192, vmem_budget_bytes=40 << 20):
    """Fused MLP forward.

    Args:
      x: (..., in_channels) input.
      params: list of (w, b), w of shape (fan_in, fan_out), b of shape (fan_out,).
        ShiftedSoftplus is applied after every layer except the last.
    """
    in_c = params[0][0].shape[0]
    out_c = params[-1][0].shape[1]
    n_layers = len(params)
    lead_shape = x.shape[:-1]
    x2d = x.reshape(-1, in_c)
    M = x2d.shape[0]
    itemsize = x2d.dtype.itemsize

    # ---- wrapper-side param prep (tiny arrays): weights to (fan_out, fan_in)
    # for the transposed compute, bias to (fan_out, 1) in f32, and the -log(2)
    # activation shift folded into the *next* layer's bias (exact algebra):
    #   W_l @ (softplus(z) - log2) + b_l == W_l @ softplus(z) + (b_l - log2 * W_l.sum(0))
    wts, bs = [], []
    for l, (w, b) in enumerate(params):
        bf = b.astype(jnp.float32)
        if l > 0:
            bf = bf - _LOG2 * w.astype(jnp.float32).sum(axis=0)
        wts.append(w.T)                              # (fan_out, fan_in)
        bs.append(bf.reshape(w.shape[1], 1))          # (fan_out, 1), f32

    # ---- VMEM footprint & row-tile sizing ------------------------------------
    widths = [in_c] + [w.shape[1] for (w, _) in params]
    max_w = max(widths)
    w_bytes = sum(_padded_bytes(wt.shape[0], wt.shape[1], wt.dtype.itemsize) for wt in wts)
    b_bytes = sum(_padded_bytes(b2.shape[0], 1, 4) for b2 in bs)
    resident = 2 * (w_bytes + b_bytes)  # conservative: assume double-buffered
    per_row = (2 * _round_up(in_c, 128) * itemsize    # double-buffered x tile (tm, in_c)
               + 2 * _round_up(out_c, 8) * itemsize   # double-buffered out tile (out_c, tm)
               + 3 * 4 * _round_up(max_w, 8))         # live f32 activations / temps

    avail = vmem_budget_bytes - resident - (2 << 20)
    if avail < 128 * per_row:
        # TODO(synk): tile the widest layer over N (and K with a pl.when-guarded
        # f32 accumulator) instead of keeping all weights VMEM-resident.
        raise NotImplementedError(
            "MLP weights too large for the fully-fused weights-resident kernel")

    if M <= 128:
        tm = M                                   # block == full dim, always legal
    else:
        tm_fit = (avail // per_row) // 128 * 128
        tm_split = _round_up(pl.cdiv(M, 2), 128)  # >= 2 grid steps (v7x megacore)
        tm = max(128, min(max_tile_m, tm_fit, tm_split))
    grid = (pl.cdiv(M, tm),)

    vmem_limit = int(min(64 << 20, max(16 << 20, resident + tm * per_row + (4 << 20))))

    flat = []
    for wt, b2 in zip(wts, bs):
        flat += [wt, b2]

    def build(single_buffer_weights):
        w_kwargs = {}
        if single_buffer_weights:
            # Constant block index => fetched once; single-buffer to halve the
            # resident weight VMEM (matters on v7x's 64 MiB).
            w_kwargs = dict(pipeline_mode=pl.Buffered(1))
        in_specs = [pl.BlockSpec((tm, in_c), lambda i: (i, 0))]
        for wt, b2 in zip(wts, bs):
            ko, ki = wt.shape
            in_specs.append(pl.BlockSpec((ko, ki), lambda i: (0, 0), **w_kwargs))
            in_specs.append(pl.BlockSpec((ko, 1), lambda i: (0, 0), **w_kwargs))
        return pl.pallas_call(
            _make_mlp_kernel(n_layers),
            out_shape=jax.ShapeDtypeStruct((out_c, M), x.dtype),
            grid_spec=pltpu.PrefetchScalarGridSpec(
                num_scalar_prefetch=0,
                grid=grid,
                in_specs=in_specs,
                out_specs=pl.BlockSpec((out_c, tm), lambda i: (0, i)),
            ),
            compiler_params=pltpu.CompilerParams(
                dimension_semantics=("parallel",),
                vmem_limit_bytes=vmem_limit,
            ),
        )

    try:
        out_t = build(True)(x2d, *flat)
    except Exception:
        # pl.Buffered(1) (single-buffered resident weights) not supported on this
        # jax version -- fall back to default double buffering.
        out_t = build(False)(x2d, *flat)

    # Transposed (out_c, M) result back to row-major (..., out_c): layout plumbing.
    return out_t.T.reshape(lead_shape + (out_c,))


def _mlp_ref(x, params):
    """Pure-JAX reference of the PyTorch MLP with 'ssp' activation."""
    in_c = params[0][0].shape[0]
    out_c = params[-1][0].shape[1]
    h = x.reshape(-1, in_c).astype(jnp.float32)
    for i, (w, b) in enumerate(params):
        h = jnp.dot(h, w.astype(jnp.float32)) + b.astype(jnp.float32)
        if i < len(params) - 1:
            h = jax.nn.softplus(h) - _LOG2
    return h.reshape(x.shape[:-1] + (out_c,)).astype(x.dtype)


if __name__ == "__main__":
    key = jax.random.PRNGKey(0)

    # Linear(in->hid) -> ssp -> Linear(hid->hid) -> ssp -> Linear(hid->out)
    batch, seq = 2, 8
    in_c, hid_c, out_c = 16, 32, 8
    num_hidden_layers = 1
    dims = [in_c] + [hid_c] * (num_hidden_layers + 1) + [out_c]

    keys = jax.random.split(key, 2 * (len(dims) - 1) + 1)
    x = jax.random.normal(keys[0], (batch, seq, in_c), dtype=jnp.float32)

    params = []
    for li in range(len(dims) - 1):
        fan_in, fan_out = dims[li], dims[li + 1]
        limit = (6.0 / (fan_in + fan_out)) ** 0.5  # xavier_uniform, like reset_parameters
        w = jax.random.uniform(
            keys[1 + 2 * li], (fan_in, fan_out), jnp.float32, -limit, limit
        )
        b = jax.random.normal(keys[2 + 2 * li], (fan_out,), jnp.float32) * 0.1
        params.append((w, b))

    out = mlp_forward(x, params)
    out = jax.block_until_ready(out)

    ref = _mlp_ref(x, params)
    assert out.shape == (batch, seq, out_c) and out.dtype == x.dtype
    # Tolerance covers MXU rounding differences and the exact-algebra bias fold;
    # structural bugs (missing bias / wrong activation / transposed weight) are
    # O(0.1-1) and would fail this check.
    assert jnp.allclose(out, ref, atol=2e-2, rtol=2e-2), "mismatch vs reference"

    print("KERNEL_OK")
</pallas_src>

<mosaic_0001>
module attributes {stable_mosaic.version = 11 : i64} {
  func.func @kernel(%arg0: i32, %arg1: memref<16x16xf32, #tpu.memory_space<vmem>>, %arg2: memref<32x16xf32, #tpu.memory_space<vmem>>, %arg3: memref<32x1xf32, #tpu.memory_space<vmem>>, %arg4: memref<32x32xf32, #tpu.memory_space<vmem>>, %arg5: memref<32x1xf32, #tpu.memory_space<vmem>>, %arg6: memref<8x32xf32, #tpu.memory_space<vmem>>, %arg7: memref<8x1xf32, #tpu.memory_space<vmem>>, %arg8: memref<8x16xf32, #tpu.memory_space<vmem>>) attributes {dimension_semantics = [#tpu.dimension_semantics<parallel>], iteration_bounds = array<i64: 1>, scalar_prefetch = 0 : i64, scratch_operands = 0 : i64, tpu.core_type = #tpu.core_type<tc>, window_params = [{transform_indices = @transform_0, window_bounds = array<i64: 16, 16>}, {pipeline_mode = #tpu.pipeline_mode<synchronous>, transform_indices = @transform_1, window_bounds = array<i64: 32, 16>}, {pipeline_mode = #tpu.pipeline_mode<synchronous>, transform_indices = @transform_2, window_bounds = array<i64: 32, 1>}, {pipeline_mode = #tpu.pipeline_mode<synchronous>, transform_indices = @transform_3, window_bounds = array<i64: 32, 32>}, {pipeline_mode = #tpu.pipeline_mode<synchronous>, transform_indices = @transform_4, window_bounds = array<i64: 32, 1>}, {pipeline_mode = #tpu.pipeline_mode<synchronous>, transform_indices = @transform_5, window_bounds = array<i64: 8, 32>}, {pipeline_mode = #tpu.pipeline_mode<synchronous>, transform_indices = @transform_6, window_bounds = array<i64: 8, 1>}, {transform_indices = @transform_7, window_bounds = array<i64: 8, 16>}]} {
    %c0 = arith.constant 0 : index
    %c0_0 = arith.constant 0 : index
    %0 = vector.load %arg2[%c0, %c0_0] : memref<32x16xf32, #tpu.memory_space<vmem>>, vector<32x16xf32>
    %c0_1 = arith.constant 0 : index
    %c0_2 = arith.constant 0 : index
    %1 = vector.load %arg3[%c0_1, %c0_2] : memref<32x1xf32, #tpu.memory_space<vmem>>, vector<32x1xf32>
    %c0_3 = arith.constant 0 : index
    %c0_4 = arith.constant 0 : index
    %2 = vector.load %arg1[%c0_3, %c0_4] : memref<16x16xf32, #tpu.memory_space<vmem>>, vector<16x16xf32>
    %cst = arith.constant dense<0.000000e+00> : vector<32x16xf32>
    %3 = tpu.matmul %0, %2, %cst {dimension_numbers = #tpu.dot_dimension_numbers<[1], [1], [0], [0], [0, 0, 1, 0], [], []>} : vector<32x16xf32>, vector<16x16xf32>, vector<32x16xf32> -> vector<32x16xf32>
    %4 = vector.broadcast %1 : vector<32x1xf32> to vector<32x16xf32>
    %5 = arith.addf %3, %4 : vector<32x16xf32>
    %cst_5 = arith.constant 0.000000e+00 : f32
    %6 = vector.broadcast %cst_5 : f32 to vector<32x16xf32>
    %7 = arith.maximumf %5, %6 : vector<32x16xf32>
    %8 = math.absf %5 : vector<32x16xf32>
    %cst_6 = arith.constant 0.000000e+00 : f32
    %9 = vector.broadcast %cst_6 : f32 to vector<32x16xf32>
    %10 = arith.subf %9, %8 : vector<32x16xf32>
    %11 = math.exp %10 : vector<32x16xf32>
    %12 = math.log1p %11 : vector<32x16xf32>
    %13 = arith.addf %7, %12 : vector<32x16xf32>
    %c0_7 = arith.constant 0 : index
    %c0_8 = arith.constant 0 : index
    %14 = vector.load %arg4[%c0_7, %c0_8] : memref<32x32xf32, #tpu.memory_space<vmem>>, vector<32x32xf32>
    %c0_9 = arith.constant 0 : index
    %c0_10 = arith.constant 0 : index
    %15 = vector.load %arg5[%c0_9, %c0_10] : memref<32x1xf32, #tpu.memory_space<vmem>>, vector<32x1xf32>
    %cst_11 = arith.constant dense<0.000000e+00> : vector<32x16xf32>
    %16 = tpu.matmul %14, %13, %cst_11 {dimension_numbers = #tpu.dot_dimension_numbers<[1], [0], [0], [1], [0, 0, 1, 1], [], []>} : vector<32x32xf32>, vector<32x16xf32>, vector<32x16xf32> -> vector<32x16xf32>
    %17 = vector.broadcast %15 : vector<32x1xf32> to vector<32x16xf32>
    %18 = arith.addf %16, %17 : vector<32x16xf32>
    %cst_12 = arith.constant 0.000000e+00 : f32
    %19 = vector.broadcast %cst_12 : f32 to vector<32x16xf32>
    %20 = arith.maximumf %18, %19 : vector<32x16xf32>
    %21 = math.absf %18 : vector<32x16xf32>
    %cst_13 = arith.constant 0.000000e+00 : f32
    %22 = vector.broadcast %cst_13 : f32 to vector<32x16xf32>
    %23 = arith.subf %22, %21 : vector<32x16xf32>
    %24 = math.exp %23 : vector<32x16xf32>
    %25 = math.log1p %24 : vector<32x16xf32>
    %26 = arith.addf %20, %25 : vector<32x16xf32>
    %c0_14 = arith.constant 0 : index
    %c0_15 = arith.constant 0 : index
    %27 = vector.load %arg6[%c0_14, %c0_15] : memref<8x32xf32, #tpu.memory_space<vmem>>, vector<8x32xf32>
    %c0_16 = arith.constant 0 : index
    %c0_17 = arith.constant 0 : index
    %28 = vector.load %arg7[%c0_16, %c0_17] : memref<8x1xf32, #tpu.memory_space<vmem>>, vector<8x1xf32>
    %cst_18 = arith.constant dense<0.000000e+00> : vector<8x16xf32>
    %29 = tpu.matmul %27, %26, %cst_18 {dimension_numbers = #tpu.dot_dimension_numbers<[1], [0], [0], [1], [0, 0, 1, 1], [], []>} : vector<8x32xf32>, vector<32x16xf32>, vector<8x16xf32> -> vector<8x16xf32>
    %30 = vector.broadcast %28 : vector<8x1xf32> to vector<8x16xf32>
    %31 = arith.addf %29, %30 : vector<8x16xf32>
    %c0_19 = arith.constant 0 : index
    %c0_20 = arith.constant 0 : index
    %32 = vector.load %arg8[%c0_19, %c0_20] : memref<8x16xf32, #tpu.memory_space<vmem>>, vector<8x16xf32>
    tpu.vector_store %arg8[%c0_19, %c0_20], %31 {strides = array<i32>} : memref<8x16xf32, #tpu.memory_space<vmem>>, vector<8x16xf32>,
    return
  }
  func.func @transform_0(%arg0: i32) -> (i32, i32) {
    %c0_i32 = arith.constant 0 : i32
    %c0_i32_0 = arith.constant 0 : i32
    return %arg0, %c0_i32 : i32, i32
  }
  func.func @transform_1(%arg0: i32) -> (i32, i32) {
    %c0_i32 = arith.constant 0 : i32
    %c0_i32_0 = arith.constant 0 : i32
    %c0_i32_1 = arith.constant 0 : i32
    return %c0_i32, %c0_i32_0 : i32, i32
  }
  func.func @transform_2(%arg0: i32) -> (i32, i32) {
    %c0_i32 = arith.constant 0 : i32
    %c0_i32_0 = arith.constant 0 : i32
    %c0_i32_1 = arith.constant 0 : i32
    return %c0_i32, %c0_i32_0 : i32, i32
  }
  func.func @transform_3(%arg0: i32) -> (i32, i32) {
    %c0_i32 = arith.constant 0 : i32
    %c0_i32_0 = arith.constant 0 : i32
    %c0_i32_1 = arith.constant 0 : i32
    return %c0_i32, %c0_i32_0 : i32, i32
  }
  func.func @transform_4(%arg0: i32) -> (i32, i32) {
    %c0_i32 = arith.constant 0 : i32
    %c0_i32_0 = arith.constant 0 : i32
    %c0_i32_1 = arith.constant 0 : i32
    return %c0_i32, %c0_i32_0 : i32, i32
  }
  func.func @transform_5(%arg0: i32) -> (i32, i32) {
    %c0_i32 = arith.constant 0 : i32
    %c0_i32_0 = arith.constant 0 : i32
    %c0_i32_1 = arith.constant 0 : i32
    return %c0_i32, %c0_i32_0 : i32, i32
  }
  func.func @transform_6(%arg0: i32) -> (i32, i32) {
    %c0_i32 = arith.constant 0 : i32
    %c0_i32_0 = arith.constant 0 : i32
    %c0_i32_1 = arith.constant 0 : i32
    return %c0_i32, %c0_i32_0 : i32, i32
  }
  func.func @transform_7(%arg0: i32) -> (i32, i32) {
    %c0_i32 = arith.constant 0 : i32
    %c0_i32_0 = arith.constant 0 : i32
    return %c0_i32, %arg0 : i32, i32
  }
}

module attributes {stable_mosaic.version = 11 : i64} {
  func.func @kernel(%arg0: i32, %arg1: memref<16x16xf32, #tpu.memory_space<vmem>>, %arg2: memref<32x16xf32, #tpu.memory_space<vmem>>, %arg3: memref<32x1xf32, #tpu.memory_space<vmem>>, %arg4: memref<32x32xf32, #tpu.memory_space<vmem>>, %arg5: memref<32x1xf32, #tpu.memory_space<vmem>>, %arg6: memref<8x32xf32, #tpu.memory_space<vmem>>, %arg7: memref<8x1xf32, #tpu.memory_space<vmem>>, %arg8: memref<8x16xf32, #tpu.memory_space<vmem>>) attributes {dimension_semantics = [#tpu.dimension_semantics<parallel>], iteration_bounds = array<i64: 1>, scalar_prefetch = 0 : i64, scratch_operands = 0 : i64, tpu.core_type = #tpu.core_type<tc>, window_params = [{transform_indices = @transform_0, window_bounds = array<i64: 16, 16>}, {pipeline_mode = #tpu.pipeline_mode<synchronous>, transform_indices = @transform_1, window_bounds = array<i64: 32, 16>}, {pipeline_mode = #tpu.pipeline_mode<synchronous>, transform_indices = @transform_2, window_bounds = array<i64: 32, 1>}, {pipeline_mode = #tpu.pipeline_mode<synchronous>, transform_indices = @transform_3, window_bounds = array<i64: 32, 32>}, {pipeline_mode = #tpu.pipeline_mode<synchronous>, transform_indices = @transform_4, window_bounds = array<i64: 32, 1>}, {pipeline_mode = #tpu.pipeline_mode<synchronous>, transform_indices = @transform_5, window_bounds = array<i64: 8, 32>}, {pipeline_mode = #tpu.pipeline_mode<synchronous>, transform_indices = @transform_6, window_bounds = array<i64: 8, 1>}, {transform_indices = @transform_7, window_bounds = array<i64: 8, 16>}]} {
    %c0 = arith.constant 0 : index
    %c0_0 = arith.constant 0 : index
    %0 = vector.load %arg2[%c0, %c0_0] : memref<32x16xf32, #tpu.memory_space<vmem>>, vector<32x16xf32>
    %c0_1 = arith.constant 0 : index
    %c0_2 = arith.constant 0 : index
    %1 = vector.load %arg3[%c0_1, %c0_2] : memref<32x1xf32, #tpu.memory_space<vmem>>, vector<32x1xf32>
    %c0_3 = arith.constant 0 : index
    %c0_4 = arith.constant 0 : index
    %2 = vector.load %arg1[%c0_3, %c0_4] : memref<16x16xf32, #tpu.memory_space<vmem>>, vector<16x16xf32>
    %cst = arith.constant dense<0.000000e+00> : vector<32x16xf32>
    %3 = tpu.matmul %0, %2, %cst {dimension_numbers = #tpu.dot_dimension_numbers<[1], [1], [0], [0], [0, 0, 1, 0], [], []>} : vector<32x16xf32>, vector<16x16xf32>, vector<32x16xf32> -> vector<32x16xf32>
    %4 = vector.broadcast %1 : vector<32x1xf32> to vector<32x16xf32>
    %5 = arith.addf %3, %4 : vector<32x16xf32>
    %cst_5 = arith.constant 0.000000e+00 : f32
    %6 = vector.broadcast %cst_5 : f32 to vector<32x16xf32>
    %7 = arith.maximumf %5, %6 : vector<32x16xf32>
    %8 = math.absf %5 : vector<32x16xf32>
    %cst_6 = arith.constant 0.000000e+00 : f32
    %9 = vector.broadcast %cst_6 : f32 to vector<32x16xf32>
    %10 = arith.subf %9, %8 : vector<32x16xf32>
    %11 = math.exp %10 : vector<32x16xf32>
    %12 = math.log1p %11 : vector<32x16xf32>
    %13 = arith.addf %7, %12 : vector<32x16xf32>
    %c0_7 = arith.constant 0 : index
    %c0_8 = arith.constant 0 : index
    %14 = vector.load %arg4[%c0_7, %c0_8] : memref<32x32xf32, #tpu.memory_space<vmem>>, vector<32x32xf32>
    %c0_9 = arith.constant 0 : index
    %c0_10 = arith.constant 0 : index
    %15 = vector.load %arg5[%c0_9, %c0_10] : memref<32x1xf32, #tpu.memory_space<vmem>>, vector<32x1xf32>
    %cst_11 = arith.constant dense<0.000000e+00> : vector<32x16xf32>
    %16 = tpu.matmul %14, %13, %cst_11 {dimension_numbers = #tpu.dot_dimension_numbers<[1], [0], [0], [1], [0, 0, 1, 1], [], []>} : vector<32x32xf32>, vector<32x16xf32>, vector<32x16xf32> -> vector<32x16xf32>
    %17 = vector.broadcast %15 : vector<32x1xf32> to vector<32x16xf32>
    %18 = arith.addf %16, %17 : vector<32x16xf32>
    %cst_12 = arith.constant 0.000000e+00 : f32
    %19 = vector.broadcast %cst_12 : f32 to vector<32x16xf32>
    %20 = arith.maximumf %18, %19 : vector<32x16xf32>
    %21 = math.absf %18 : vector<32x16xf32>
    %cst_13 = arith.constant 0.000000e+00 : f32
    %22 = vector.broadcast %cst_13 : f32 to vector<32x16xf32>
    %23 = arith.subf %22, %21 : vector<32x16xf32>
    %24 = math.exp %23 : vector<32x16xf32>
    %25 = math.log1p %24 : vector<32x16xf32>
    %26 = arith.addf %20, %25 : vector<32x16xf32>
    %c0_14 = arith.constant 0 : index
    %c0_15 = arith.constant 0 : index
    %27 = vector.load %arg6[%c0_14, %c0_15] : memref<8x32xf32, #tpu.memory_space<vmem>>, vector<8x32xf32>
    %c0_16 = arith.constant 0 : index
    %c0_17 = arith.constant 0 : index
    %28 = vector.load %arg7[%c0_16, %c0_17] : memref<8x1xf32, #tpu.memory_space<vmem>>, vector<8x1xf32>
    %cst_18 = arith.constant dense<0.000000e+00> : vector<8x16xf32>
    %29 = tpu.matmul %27, %26, %cst_18 {dimension_numbers = #tpu.dot_dimension_numbers<[1], [0], [0], [1], [0, 0, 1, 1], [], []>} : vector<8x32xf32>, vector<32x16xf32>, vector<8x16xf32> -> vector<8x16xf32>
    %30 = vector.broadcast %28 : vector<8x1xf32> to vector<8x16xf32>
    %31 = arith.addf %29, %30 : vector<8x16xf32>
    %c0_19 = arith.constant 0 : index
    %c0_20 = arith.constant 0 : index
    %32 = vector.load %arg8[%c0_19, %c0_20] : memref<8x16xf32, #tpu.memory_space<vmem>>, vector<8x16xf32>
    tpu.vector_store %arg8[%c0_19, %c0_20], %31 {strides = array<i32>} : memref<8x16xf32, #tpu.memory_space<vmem>>, vector<8x16xf32>,
    return
  }
  func.func @transform_0(%arg0: i32) -> (i32, i32) {
    %c0_i32 = arith.constant 0 : i32
    %c0_i32_0 = arith.constant 0 : i32
    return %arg0, %c0_i32 : i32, i32
  }
  func.func @transform_1(%arg0: i32) -> (i32, i32) {
    %c0_i32 = arith.constant 0 : i32
    %c0_i32_0 = arith.constant 0 : i32
    %c0_i32_1 = arith.constant 0 : i32
    return %c0_i32, %c0_i32_0 : i32, i32
  }
  func.func @transform_2(%arg0: i32) -> (i32, i32) {
    %c0_i32 = arith.constant 0 : i32
    %c0_i32_0 = arith.constant 0 : i32
    %c0_i32_1 = arith.constant 0 : i32
    return %c0_i32, %c0_i32_0 : i32, i32
  }
  func.func @transform_3(%arg0: i32) -> (i32, i32) {
    %c0_i32 = arith.constant 0 : i32
    %c0_i32_0 = arith.constant 0 : i32
    %c0_i32_1 = arith.constant 0 : i32
    return %c0_i32, %c0_i32_0 : i32, i32
  }
  func.func @transform_4(%arg0: i32) -> (i32, i32) {
    %c0_i32 = arith.constant 0 : i32
    %c0_i32_0 = arith.constant 0 : i32
    %c0_i32_1 = arith.constant 0 : i32
    return %c0_i32, %c0_i32_0 : i32, i32
  }
  func.func @transform_5(%arg0: i32) -> (i32, i32) {
    %c0_i32 = arith.constant 0 : i32
    %c0_i32_0 = arith.constant 0 : i32
    %c0_i32_1 = arith.constant 0 : i32
    return %c0_i32, %c0_i32_0 : i32, i32
  }
  func.func @transform_6(%arg0: i32) -> (i32, i32) {
    %c0_i32 = arith.constant 0 : i32
    %c0_i32_0 = arith.constant 0 : i32
    %c0_i32_1 = arith.constant 0 : i32
    return %c0_i32, %c0_i32_0 : i32, i32
  }
  func.func @transform_7(%arg0: i32) -> (i32, i32) {
    %c0_i32 = arith.constant 0 : i32
    %c0_i32_0 = arith.constant 0 : i32
    return %c0_i32, %arg0 : i32, i32
  }
}

</mosaic_0001>

<llo_original>
// kernel: tpu_custom_call.1
$region0: #{tpu_custom_call.1}
  #allocation0 [shape = 'u32[]', space=smem, size = 0x4, offset = 0x4, fixed_abs, tag = 'smem constant byte address 0x4 - core index']
  #allocation1 [shape = 'u32[72,128]{1,0:T(1,128)}', space=vmem, size = 0x9000, scoped, tag = 'internal scratch']
  %s0 = inlined_call_operand.vmem [shape: f32[16,16], index: 0, kind: input, shape index: {}]
  %s1 = inlined_call_operand.vmem [shape: f32[32,16], index: 1, kind: input, shape index: {}]
  %s2 = inlined_call_operand.vmem [shape: f32[32,1], index: 2, kind: input, shape index: {}]
  %s3 = inlined_call_operand.vmem [shape: f32[32,32], index: 3, kind: input, shape index: {}]
  %s4 = inlined_call_operand.vmem [shape: f32[32,1], index: 4, kind: input, shape index: {}]
  %s5 = inlined_call_operand.vmem [shape: f32[8,32], index: 5, kind: input, shape index: {}]
  %s6 = inlined_call_operand.vmem [shape: f32[8,1], index: 6, kind: input, shape index: {}]
  %s7 = inlined_call_operand.hbm [shape: f32[8,16], index: 7, kind: output, shape index: {}]
  %s8 = sld [smem:[#allocation0]]
  $region38: #{tpu_custom_call.1} parent=0
    _
  %s10 = ssub.s32 1, %s8
  %s11 = scalar_select 0, %s10, %s8
  $region1: #{tpu_custom_call.1} parent=0
    #allocation2 [shape = 'u8[4096]{0}', space=vmem, size = 0x1000, scoped, tag = 'output window, operand 0, single buffered']
    #allocation3 [shape = 's32[1]{0}', space=sflag, size = 0x4, scoped, tag = 'scoped memory for tpu_custom_call.1']
    %12 = vsyncpa [#allocation3], 0
    // Predicated region
    $region2: #{tpu_custom_call.1} parent=1 // pred_check
      _
    $region3: #{tpu_custom_call.1} parent=1 // pred_check_branch
      %14 = sbr.rel (0) target = $region5
    $region4: #{tpu_custom_call.1} parent=1 // pred_region
      _
    $region5: #{tpu_custom_call.1} parent=1 // pred_fallthru
      _
    // Predicated region
    $region6: #{tpu_custom_call.1} parent=1 // pred_check
      _
    $region7: #{tpu_custom_call.1} parent=1 // pred_check_branch
      %16 = sbr.rel (0) target = $region9
    $region8: #{tpu_custom_call.1} parent=1 // pred_region
      _
    $region9: #{tpu_custom_call.1} parent=1 // pred_fallthru
      _
    // Predicated region
    $region10: #{tpu_custom_call.1} parent=1 // pred_check
      _
    $region11: #{tpu_custom_call.1} parent=1 // pred_check_branch
      %18 = sbr.rel (0) target = $region13
    $region12: #{tpu_custom_call.1} parent=1 // pred_region
      _
    $region13: #{tpu_custom_call.1} parent=1 // pred_fallthru
      _
    // Predicated region
    $region14: #{tpu_custom_call.1} parent=1 // pred_check
      _
    $region15: #{tpu_custom_call.1} parent=1 // pred_check_branch
      %20 = sbr.rel (0) target = $region17
    $region16: #{tpu_custom_call.1} parent=1 // pred_region
      _
    $region17: #{tpu_custom_call.1} parent=1 // pred_fallthru
      _
    // Predicated region
    $region18: #{tpu_custom_call.1} parent=1 // pred_check
      _
    $region19: #{tpu_custom_call.1} parent=1 // pred_check_branch
      %22 = sbr.rel (0) target = $region21
    $region20: #{tpu_custom_call.1} parent=1 // pred_region
      _
    $region21: #{tpu_custom_call.1} parent=1 // pred_fallthru
      _
    // Predicated region
    $region22: #{tpu_custom_call.1} parent=1 // pred_check
      _
    $region23: #{tpu_custom_call.1} parent=1 // pred_check_branch
      %24 = sbr.rel (0) target = $region25
    $region24: #{tpu_custom_call.1} parent=1 // pred_region
      _
    $region25: #{tpu_custom_call.1} parent=1 // pred_fallthru
      _
    // Predicated region
    $region26: #{tpu_custom_call.1} parent=1 // pred_check
      _
    $region27: #{tpu_custom_call.1} parent=1 // pred_check_branch
      %26 = sbr.rel (0) target = $region29
    $region28: #{tpu_custom_call.1} parent=1 // pred_region
      _
    $region29: #{tpu_custom_call.1} parent=1 // pred_fallthru
      _
    %v27 = vld [vmem:[%s1] sm:$0xff]
    %v28 = vld [vmem:[%s1 + $0x8] sm:$0xff]
    %v29 = vld [vmem:[%s1 + $0x10] sm:$0xff]
    %v30 = vld [vmem:[%s1 + $0x18] sm:$0xff]
    %v31 = vld [vmem:[%s2] sm:$0xff]
    %v32 = vld [vmem:[%s2 + $0x8] sm:$0xff]
    %v33 = vld [vmem:[%s2 + $0x10] sm:$0xff]
    %v34 = vld [vmem:[%s2 + $0x18] sm:$0xff]
    %v35 = vld [vmem:[%s0] sm:$0xff]
    %v36 = vld [vmem:[%s0 + $0x8] sm:$0xff]
    %38 = vset.pattern.permute.xlu0 0
    %39 = vperm.xlu0 %38, %v31
    %v40 = vpop.permute.xlu0 %39
    %43 = vset.pattern.permute.xlu0 0
    %44 = vperm.xlu0 %43, %v32
    %v45 = vpop.permute.xlu0 %44
    %48 = vset.pattern.permute.xlu0 0
    %49 = vperm.xlu0 %48, %v33
    %v50 = vpop.permute.xlu0 %49
    %53 = vset.pattern.permute.xlu0 0
    %54 = vperm.xlu0 %53, %v34
    %v55 = vpop.permute.xlu0 %54
    %vm57 = vcmask 130048
    %v59 = vsel %vm57, %v27, 0
    %v62 = vsel %vm57, %v28, 0
    %v65 = vsel %vm57, %v29, 0
    %v68 = vsel %vm57, %v30, 0
    %v71 = vsel %vm57, %v35, 0
    %v74 = vsel %vm57, %v36, 0
    %76 = vmatpush.xpose.msra.mxu0 0.0
    %77 = vmatpush.xpose.msra.mxu0 0.0
    %78 = vmatpush.xpose.msra.mxu0 0.0
    %79 = vmatpush.xpose.msra.mxu0 0.0
    %80 = vmatpush.xpose.msra.mxu0 0.0
    %81 = vmatpush.xpose.msra.mxu0 0.0
    %82 = vmatpush.xpose.msra.mxu0 0.0
    %83 = vmatpush.xpose.msra.mxu0 0.0
    %84 = vmatpush.xpose.msra.mxu0 0.0
    %85 = vmatpush.xpose.msra.mxu0 0.0
    %86 = vmatpush.xpose.msra.mxu0 0.0
    %87 = vmatpush.xpose.msra.mxu0 0.0
    %88 = vmatpush.xpose.msra.mxu0 0.0
    %89 = vmatpush.xpose.msra.mxu0 0.0
    %90 = vmatpush.xpose.msra.mxu0 %v74
    %91 = vmatpush.xpose.msra.mxu0 %v71
    %92 = vmatmul.f32.gmra.mxu0 %v59
    %v93 = vpop.f32.mrf.mxu0
    %v94 = vadd.f32 %v40, %v93
    %95 = vmatmul.f32.gmra.mxu0 %v62
    %v96 = vpop.f32.mrf.mxu0
    %v97 = vadd.f32 %v45, %v96
    %98 = vmatmul.f32.gmra.mxu0 %v65
    %v99 = vpop.f32.mrf.mxu0
    %v100 = vadd.f32 %v50, %v99
    %101 = vmatmul.f32.gmra.mxu0 %v68
    %v102 = vpop.f32.mrf.mxu0
    %v103 = vadd.f32 %v55, %v102
    %104 = vdwg.mxu0
    %v105 = vmax.f32 %v94, 0.0
    %v106 = vmax.f32 %v97, 0.0
    %v107 = vmax.f32 %v100, 0.0
    %v108 = vmax.f32 %v103, 0.0
    %v109 = vand.u32 2147483647, %v94
    %v110 = vand.u32 2147483647, %v97
    %v111 = vand.u32 2147483647, %v100
    %v112 = vand.u32 2147483647, %v103
    %v113 = vsub.f32 0.0, %v109
    %v114 = vsub.f32 0.0, %v110
    %v115 = vsub.f32 0.0, %v111
    %v116 = vsub.f32 0.0, %v112
    %v117 = vmul.f32 %v113, 1.442695
    %v118 = vpow.pop %v117
    %v119 = vmul.f32 %v114, 1.442695
    %v120 = vpow.pop %v119
    %v121 = vmul.f32 %v115, 1.442695
    %v122 = vpow.pop %v121
    %v123 = vmul.f32 %v116, 1.442695
    %v124 = vpow.pop %v123
    %v125 = vadd.f32 %v118, 1.0
    %v126 = vlog2.pop %v125
    %v127 = vmul.f32 %v126, 0.6931472
    %v128 = vmul.f32 -0.5, %v118
    %v129 = vadd.f32 %v128, 1.0
    %v130 = vmul.f32 %v129, %v118
    %v131 = vand.u32 2147483647, %v118
    %vm132 = vcmp.lt.f32.partialorder %v131, 0.0004427343
    %v133 = vsel %vm132, %v130, %v127
    %v134 = vadd.f32 %v120, 1.0
    %v135 = vlog2.pop %v134
    %v136 = vmul.f32 %v135, 0.6931472
    %v137 = vmul.f32 -0.5, %v120
    %v138 = vadd.f32 %v137, 1.0
    %v139 = vmul.f32 %v138, %v120
    %v140 = vand.u32 2147483647, %v120
    %vm141 = vcmp.lt.f32.partialorder %v140, 0.0004427343
    %v142 = vsel %vm141, %v139, %v136
    %v143 = vadd.f32 %v122, 1.0
    %v144 = vlog2.pop %v143
    %v145 = vmul.f32 %v144, 0.6931472
    %v146 = vmul.f32 -0.5, %v122
    %v147 = vadd.f32 %v146, 1.0
    %v148 = vmul.f32 %v147, %v122
    %v149 = vand.u32 2147483647, %v122
    %vm150 = vcmp.lt.f32.partialorder %v149, 0.0004427343
    %v151 = vsel %vm150, %v148, %v145
    %v152 = vadd.f32 %v124, 1.0
    %v153 = vlog2.pop %v152
    %v154 = vmul.f32 %v153, 0.6931472
    %v155 = vmul.f32 -0.5, %v124
    %v156 = vadd.f32 %v155, 1.0
    %v157 = vmul.f32 %v156, %v124
    %v158 = vand.u32 2147483647, %v124
    %vm159 = vcmp.lt.f32.partialorder %v158, 0.0004427343
    %v160 = vsel %vm159, %v157, %v154
    %v161 = vadd.f32 %v105, %v133
    %v162 = vadd.f32 %v106, %v142
    %v163 = vadd.f32 %v107, %v151
    %v164 = vadd.f32 %v108, %v160
    %v165 = vld [vmem:[%s3] sm:$0xff]
    %v166 = vld [vmem:[%s3 + $0x8] sm:$0xff]
    %v167 = vld [vmem:[%s3 + $0x10] sm:$0xff]
    %v168 = vld [vmem:[%s3 + $0x18] sm:$0xff]
    %v169 = vld [vmem:[%s4] sm:$0xff]
    %v170 = vld [vmem:[%s4 + $0x8] sm:$0xff]
    %v171 = vld [vmem:[%s4 + $0x10] sm:$0xff]
    %v172 = vld [vmem:[%s4 + $0x18] sm:$0xff]
    %174 = vset.pattern.permute.xlu0 0
    %175 = vperm.xlu0 %174, %v169
    %v176 = vpop.permute.xlu0 %175
    %179 = vset.pattern.permute.xlu0 0
    %180 = vperm.xlu0 %179, %v170
    %v181 = vpop.permute.xlu0 %180
    %184 = vset.pattern.permute.xlu0 0
    %185 = vperm.xlu0 %184, %v171
    %v186 = vpop.permute.xlu0 %185
    %189 = vset.pattern.permute.xlu0 0
    %190 = vperm.xlu0 %189, %v172
    %v191 = vpop.permute.xlu0 %190
    %vm193 = vcmask 261120
    %v195 = vsel %vm193, %v165, 0
    %v198 = vsel %vm193, %v166, 0
    %v201 = vsel %vm193, %v167, 0
    %v204 = vsel %vm193, %v168, 0
    %206 = vmatpush.msra.mxu0 0.0
    %207 = vmatpush.msra.mxu0 0.0
    %208 = vmatpush.msra.mxu0 0.0
    %209 = vmatpush.msra.mxu0 0.0
    %210 = vmatpush.msra.mxu0 0.0
    %211 = vmatpush.msra.mxu0 0.0
    %212 = vmatpush.msra.mxu0 0.0
    %213 = vmatpush.msra.mxu0 0.0
    %214 = vmatpush.msra.mxu0 0.0
    %215 = vmatpush.msra.mxu0 0.0
    %216 = vmatpush.msra.mxu0 0.0
    %217 = vmatpush.msra.mxu0 0.0
    %218 = vmatpush.msra.mxu0 %v164
    %219 = vmatpush.msra.mxu0 %v163
    %220 = vmatpush.msra.mxu0 %v162
    %221 = vmatpush.msra.mxu0 %v161
    %222 = vmatmul.f32.gmra.mxu0 %v195
    %v223 = vpop.f32.mrf.mxu0
    %v224 = vadd.f32 %v176, %v223
    %225 = vmatmul.f32.gmra.mxu0 %v198
    %v226 = vpop.f32.mrf.mxu0
    %v227 = vadd.f32 %v181, %v226
    %228 = vmatmul.f32.gmra.mxu0 %v201
    %v229 = vpop.f32.mrf.mxu0
    %v230 = vadd.f32 %v186, %v229
    %231 = vmatmul.f32.gmra.mxu0 %v204
    %v232 = vpop.f32.mrf.mxu0
    %v233 = vadd.f32 %v191, %v232
    %234 = vdwg.mxu0
    %v235 = vmax.f32 %v224, 0.0
    %v236 = vmax.f32 %v227, 0.0
    %v237 = vmax.f32 %v230, 0.0
    %v238 = vmax.f32 %v233, 0.0
    %v239 = vand.u32 2147483647, %v224
    %v240 = vand.u32 2147483647, %v227
    %v241 = vand.u32 2147483647, %v230
    %v242 = vand.u32 2147483647, %v233
    %v243 = vsub.f32 0.0, %v239
    %v244 = vsub.f32 0.0, %v240
    %v245 = vsub.f32 0.0, %v241
    %v246 = vsub.f32 0.0, %v242
    %v247 = vmul.f32 %v243, 1.442695
    %v248 = vpow.pop %v247
    %v249 = vmul.f32 %v244, 1.442695
    %v250 = vpow.pop %v249
    %v251 = vmul.f32 %v245, 1.442695
    %v252 = vpow.pop %v251
    %v253 = vmul.f32 %v246, 1.442695
    %v254 = vpow.pop %v253
    %v255 = vadd.f32 %v248, 1.0
    %v256 = vlog2.pop %v255
    %v257 = vmul.f32 %v256, 0.6931472
    %v258 = vmul.f32 -0.5, %v248
    %v259 = vadd.f32 %v258, 1.0
    %v260 = vmul.f32 %v259, %v248
    %v261 = vand.u32 2147483647, %v248
    %vm262 = vcmp.lt.f32.partialorder %v261, 0.0004427343
    %v263 = vsel %vm262, %v260, %v257
    %v264 = vadd.f32 %v250, 1.0
    %v265 = vlog2.pop %v264
    %v266 = vmul.f32 %v265, 0.6931472
    %v267 = vmul.f32 -0.5, %v250
    %v268 = vadd.f32 %v267, 1.0
    %v269 = vmul.f32 %v268, %v250
    %v270 = vand.u32 2147483647, %v250
    %vm271 = vcmp.lt.f32.partialorder %v270, 0.0004427343
    %v272 = vsel %vm271, %v269, %v266
    %v273 = vadd.f32 %v252, 1.0
    %v274 = vlog2.pop %v273
    %v275 = vmul.f32 %v274, 0.6931472
    %v276 = vmul.f32 -0.5, %v252
    %v277 = vadd.f32 %v276, 1.0
    %v278 = vmul.f32 %v277, %v252
    %v279 = vand.u32 2147483647, %v252
    %vm280 = vcmp.lt.f32.partialorder %v279, 0.0004427343
    %v281 = vsel %vm280, %v278, %v275
    %v282 = vadd.f32 %v254, 1.0
    %v283 = vlog2.pop %v282
    %v284 = vmul.f32 %v283, 0.6931472
    %v285 = vmul.f32 -0.5, %v254
    %v286 = vadd.f32 %v285, 1.0
    %v287 = vmul.f32 %v286, %v254
    %v288 = vand.u32 2147483647, %v254
    %vm289 = vcmp.lt.f32.partialorder %v288, 0.0004427343
    %v290 = vsel %vm289, %v287, %v284
    %v291 = vadd.f32 %v235, %v263
    %v292 = vadd.f32 %v236, %v272
    %v293 = vadd.f32 %v237, %v281
    %v294 = vadd.f32 %v238, %v290
    %v295 = vld [vmem:[%s5] sm:$0xff]
    %v296 = vld [vmem:[%s6] sm:$0xff]
    %298 = vset.pattern.permute.xlu0 0
    %299 = vperm.xlu0 %298, %v296
    %v300 = vpop.permute.xlu0 %299
    %v303 = vsel %vm193, %v295, 0
    %305 = vmatpush.msra.mxu0 0.0
    %306 = vmatpush.msra.mxu0 0.0
    %307 = vmatpush.msra.mxu0 0.0
    %308 = vmatpush.msra.mxu0 0.0
    %309 = vmatpush.msra.mxu0 0.0
    %310 = vmatpush.msra.mxu0 0.0
    %311 = vmatpush.msra.mxu0 0.0
    %312 = vmatpush.msra.mxu0 0.0
    %313 = vmatpush.msra.mxu0 0.0
    %314 = vmatpush.msra.mxu0 0.0
    %315 = vmatpush.msra.mxu0 0.0
    %316 = vmatpush.msra.mxu0 0.0
    %317 = vmatpush.msra.mxu0 %v294
    %318 = vmatpush.msra.mxu0 %v293
    %319 = vmatpush.msra.mxu0 %v292
    %320 = vmatpush.msra.mxu0 %v291
    %321 = vmatmul.f32.gmra.mxu0 %v303
    %v322 = vpop.f32.mrf.mxu0
    %v323 = vadd.f32 %v300, %v322
    %324 = vdwg.mxu0
    %325 = vst.msk [vmem:[#allocation2] sm:$0xff] %vm57, %v323
    // Predicated region
    $region30: #{tpu_custom_call.1} parent=1 // pred_check
      _
    $region31: #{tpu_custom_call.1} parent=1 // pred_check_branch
      %327 = sbr.rel (0) target = $region33
    $region32: #{tpu_custom_call.1} parent=1 // pred_region
      %329 = vsyncadd [#allocation3], 0
      %s331 = sshll.u32 [#allocation2], 4
      %s332 = int_to_ptr.vmem [resolvable:$true] %s331
      %s333 = sshll.u32 %s7, 4
      %s334 = int_to_ptr.hbm [resolvable:$true] %s333
      %336 = dma.vmem_to_hbm [thread:$0]  %s332, 128, %s334, [#allocation3]
    $region33: #{tpu_custom_call.1} parent=1 // pred_fallthru
      _
    // Predicated region
    $region34: #{tpu_custom_call.1} parent=1 // pred_check
      _
    $region35: #{tpu_custom_call.1} parent=1 // pred_check_branch
      %338 = sbr.rel (0) target = $region37
    $region36: #{tpu_custom_call.1} parent=1 // pred_region
      %340 = dma.done [#allocation3], 128
    $region37: #{tpu_custom_call.1} parent=1 // pred_fallthru
      _
    %341 = vsyncpa [#allocation3], 1

// kernel: tpu_custom_call.1
$region0: #{tpu_custom_call.1}
  #allocation0 [shape = 'u32[]', space=smem, size = 0x4, offset = 0x4, fixed_abs, tag = 'smem constant byte address 0x4 - core index']
  #allocation1 [shape = 'u32[72,128]{1,0:T(1,128)}', space=vmem, size = 0x9000, scoped, tag = 'internal scratch']
  %s0 = inlined_call_operand.vmem [shape: f32[16,16], index: 0, kind: input, shape index: {}]
  %s1 = inlined_call_operand.vmem [shape: f32[32,16], index: 1, kind: input, shape index: {}]
  %s2 = inlined_call_operand.vmem [shape: f32[32,1], index: 2, kind: input, shape index: {}]
  %s3 = inlined_call_operand.vmem [shape: f32[32,32], index: 3, kind: input, shape index: {}]
  %s4 = inlined_call_operand.vmem [shape: f32[32,1], index: 4, kind: input, shape index: {}]
  %s5 = inlined_call_operand.vmem [shape: f32[8,32], index: 5, kind: input, shape index: {}]
  %s6 = inlined_call_operand.vmem [shape: f32[8,1], index: 6, kind: input, shape index: {}]
  %s7 = inlined_call_operand.hbm [shape: f32[8,16], index: 7, kind: output, shape index: {}]
  %s8 = sld [smem:[#allocation0]]
  $region38: #{tpu_custom_call.1} parent=0
    _
  %s10 = ssub.s32 1, %s8
  %s11 = scalar_select 0, %s10, %s8
  $region1: #{tpu_custom_call.1} parent=0
    #allocation2 [shape = 'u8[4096]{0}', space=vmem, size = 0x1000, scoped, tag = 'output window, operand 0, single buffered']
    #allocation3 [shape = 's32[1]{0}', space=sflag, size = 0x4, scoped, tag = 'scoped memory for tpu_custom_call.1']
    %12 = vsyncpa [#allocation3], 0
    // Predicated region
    $region2: #{tpu_custom_call.1} parent=1 // pred_check
      _
    $region3: #{tpu_custom_call.1} parent=1 // pred_check_branch
      %14 = sbr.rel (0) target = $region5
    $region4: #{tpu_custom_call.1} parent=1 // pred_region
      _
    $region5: #{tpu_custom_call.1} parent=1 // pred_fallthru
      _
    // Predicated region
    $region6: #{tpu_custom_call.1} parent=1 // pred_check
      _
    $region7: #{tpu_custom_call.1} parent=1 // pred_check_branch
      %16 = sbr.rel (0) target = $region9
    $region8: #{tpu_custom_call.1} parent=1 // pred_region
      _
    $region9: #{tpu_custom_call.1} parent=1 // pred_fallthru
      _
    // Predicated region
    $region10: #{tpu_custom_call.1} parent=1 // pred_check
      _
    $region11: #{tpu_custom_call.1} parent=1 // pred_check_branch
      %18 = sbr.rel (0) target = $region13
    $region12: #{tpu_custom_call.1} parent=1 // pred_region
      _
    $region13: #{tpu_custom_call.1} parent=1 // pred_fallthru
      _
    // Predicated region
    $region14: #{tpu_custom_call.1} parent=1 // pred_check
      _
    $region15: #{tpu_custom_call.1} parent=1 // pred_check_branch
      %20 = sbr.rel (0) target = $region17
    $region16: #{tpu_custom_call.1} parent=1 // pred_region
      _
    $region17: #{tpu_custom_call.1} parent=1 // pred_fallthru
      _
    // Predicated region
    $region18: #{tpu_custom_call.1} parent=1 // pred_check
      _
    $region19: #{tpu_custom_call.1} parent=1 // pred_check_branch
      %22 = sbr.rel (0) target = $region21
    $region20: #{tpu_custom_call.1} parent=1 // pred_region
      _
    $region21: #{tpu_custom_call.1} parent=1 // pred_fallthru
      _
    // Predicated region
    $region22: #{tpu_custom_call.1} parent=1 // pred_check
      _
    $region23: #{tpu_custom_call.1} parent=1 // pred_check_branch
      %24 = sbr.rel (0) target = $region25
    $region24: #{tpu_custom_call.1} parent=1 // pred_region
      _
    $region25: #{tpu_custom_call.1} parent=1 // pred_fallthru
      _
    // Predicated region
    $region26: #{tpu_custom_call.1} parent=1 // pred_check
      _
    $region27: #{tpu_custom_call.1} parent=1 // pred_check_branch
      %26 = sbr.rel (0) target = $region29
    $region28: #{tpu_custom_call.1} parent=1 // pred_region
      _
    $region29: #{tpu_custom_call.1} parent=1 // pred_fallthru
      _
    %v27 = vld [vmem:[%s1] sm:$0xff]
    %v28 = vld [vmem:[%s1 + $0x8] sm:$0xff]
    %v29 = vld [vmem:[%s1 + $0x10] sm:$0xff]
    %v30 = vld [vmem:[%s1 + $0x18] sm:$0xff]
    %v31 = vld [vmem:[%s2] sm:$0xff]
    %v32 = vld [vmem:[%s2 + $0x8] sm:$0xff]
    %v33 = vld [vmem:[%s2 + $0x10] sm:$0xff]
    %v34 = vld [vmem:[%s2 + $0x18] sm:$0xff]
    %v35 = vld [vmem:[%s0] sm:$0xff]
    %v36 = vld [vmem:[%s0 + $0x8] sm:$0xff]
    %38 = vset.pattern.permute.xlu0 0
    %39 = vperm.xlu0 %38, %v31
    %v40 = vpop.permute.xlu0 %39
    %43 = vset.pattern.permute.xlu0 0
    %44 = vperm.xlu0 %43, %v32
    %v45 = vpop.permute.xlu0 %44
    %48 = vset.pattern.permute.xlu0 0
    %49 = vperm.xlu0 %48, %v33
    %v50 = vpop.permute.xlu0 %49
    %53 = vset.pattern.permute.xlu0 0
    %54 = vperm.xlu0 %53, %v34
    %v55 = vpop.permute.xlu0 %54
    %vm57 = vcmask 130048
    %v59 = vsel %vm57, %v27, 0
    %v62 = vsel %vm57, %v28, 0
    %v65 = vsel %vm57, %v29, 0
    %v68 = vsel %vm57, %v30, 0
    %v71 = vsel %vm57, %v35, 0
    %v74 = vsel %vm57, %v36, 0
    %76 = vmatpush.xpose.msra.mxu0 0.0
    %77 = vmatpush.xpose.msra.mxu0 0.0
    %78 = vmatpush.xpose.msra.mxu0 0.0
    %79 = vmatpush.xpose.msra.mxu0 0.0
    %80 = vmatpush.xpose.msra.mxu0 0.0
    %81 = vmatpush.xpose.msra.mxu0 0.0
    %82 = vmatpush.xpose.msra.mxu0 0.0
    %83 = vmatpush.xpose.msra.mxu0 0.0
    %84 = vmatpush.xpose.msra.mxu0 0.0
    %85 = vmatpush.xpose.msra.mxu0 0.0
    %86 = vmatpush.xpose.msra.mxu0 0.0
    %87 = vmatpush.xpose.msra.mxu0 0.0
    %88 = vmatpush.xpose.msra.mxu0 0.0
    %89 = vmatpush.xpose.msra.mxu0 0.0
    %90 = vmatpush.xpose.msra.mxu0 %v74
    %91 = vmatpush.xpose.msra.mxu0 %v71
    %92 = vmatmul.f32.gmra.mxu0 %v59
    %v93 = vpop.f32.mrf.mxu0
    %v94 = vadd.f32 %v40, %v93
    %95 = vmatmul.f32.gmra.mxu0 %v62
    %v96 = vpop.f32.mrf.mxu0
    %v97 = vadd.f32 %v45, %v96
    %98 = vmatmul.f32.gmra.mxu0 %v65
    %v99 = vpop.f32.mrf.mxu0
    %v100 = vadd.f32 %v50, %v99
    %101 = vmatmul.f32.gmra.mxu0 %v68
    %v102 = vpop.f32.mrf.mxu0
    %v103 = vadd.f32 %v55, %v102
    %104 = vdwg.mxu0
    %v105 = vmax.f32 %v94, 0.0
    %v106 = vmax.f32 %v97, 0.0
    %v107 = vmax.f32 %v100, 0.0
    %v108 = vmax.f32 %v103, 0.0
    %v109 = vand.u32 2147483647, %v94
    %v110 = vand.u32 2147483647, %v97
    %v111 = vand.u32 2147483647, %v100
    %v112 = vand.u32 2147483647, %v103
    %v113 = vsub.f32 0.0, %v109
    %v114 = vsub.f32 0.0, %v110
    %v115 = vsub.f32 0.0, %v111
    %v116 = vsub.f32 0.0, %v112
    %v117 = vmul.f32 %v113, 1.442695
    %v118 = vpow.pop %v117
    %v119 = vmul.f32 %v114, 1.442695
    %v120 = vpow.pop %v119
    %v121 = vmul.f32 %v115, 1.442695
    %v122 = vpow.pop %v121
    %v123 = vmul.f32 %v116, 1.442695
    %v124 = vpow.pop %v123
    %v125 = vadd.f32 %v118, 1.0
    %v126 = vlog2.pop %v125
    %v127 = vmul.f32 %v126, 0.6931472
    %v128 = vmul.f32 -0.5, %v118
    %v129 = vadd.f32 %v128, 1.0
    %v130 = vmul.f32 %v129, %v118
    %v131 = vand.u32 2147483647, %v118
    %vm132 = vcmp.lt.f32.partialorder %v131, 0.0004427343
    %v133 = vsel %vm132, %v130, %v127
    %v134 = vadd.f32 %v120, 1.0
    %v135 = vlog2.pop %v134
    %v136 = vmul.f32 %v135, 0.6931472
    %v137 = vmul.f32 -0.5, %v120
    %v138 = vadd.f32 %v137, 1.0
    %v139 = vmul.f32 %v138, %v120
    %v140 = vand.u32 2147483647, %v120
    %vm141 = vcmp.lt.f32.partialorder %v140, 0.0004427343
    %v142 = vsel %vm141, %v139, %v136
    %v143 = vadd.f32 %v122, 1.0
    %v144 = vlog2.pop %v143
    %v145 = vmul.f32 %v144, 0.6931472
    %v146 = vmul.f32 -0.5, %v122
    %v147 = vadd.f32 %v146, 1.0
    %v148 = vmul.f32 %v147, %v122
    %v149 = vand.u32 2147483647, %v122
    %vm150 = vcmp.lt.f32.partialorder %v149, 0.0004427343
    %v151 = vsel %vm150, %v148, %v145
    %v152 = vadd.f32 %v124, 1.0
    %v153 = vlog2.pop %v152
    %v154 = vmul.f32 %v153, 0.6931472
    %v155 = vmul.f32 -0.5, %v124
    %v156 = vadd.f32 %v155, 1.0
    %v157 = vmul.f32 %v156, %v124
    %v158 = vand.u32 2147483647, %v124
    %vm159 = vcmp.lt.f32.partialorder %v158, 0.0004427343
    %v160 = vsel %vm159, %v157, %v154
    %v161 = vadd.f32 %v105, %v133
    %v162 = vadd.f32 %v106, %v142
    %v163 = vadd.f32 %v107, %v151
    %v164 = vadd.f32 %v108, %v160
    %v165 = vld [vmem:[%s3] sm:$0xff]
    %v166 = vld [vmem:[%s3 + $0x8] sm:$0xff]
    %v167 = vld [vmem:[%s3 + $0x10] sm:$0xff]
    %v168 = vld [vmem:[%s3 + $0x18] sm:$0xff]
    %v169 = vld [vmem:[%s4] sm:$0xff]
    %v170 = vld [vmem:[%s4 + $0x8] sm:$0xff]
    %v171 = vld [vmem:[%s4 + $0x10] sm:$0xff]
    %v172 = vld [vmem:[%s4 + $0x18] sm:$0xff]
    %174 = vset.pattern.permute.xlu0 0
    %175 = vperm.xlu0 %174, %v169
    %v176 = vpop.permute.xlu0 %175
    %179 = vset.pattern.permute.xlu0 0
    %180 = vperm.xlu0 %179, %v170
    %v181 = vpop.permute.xlu0 %180
    %184 = vset.pattern.permute.xlu0 0
    %185 = vperm.xlu0 %184, %v171
    %v186 = vpop.permute.xlu0 %185
    %189 = vset.pattern.permute.xlu0 0
    %190 = vperm.xlu0 %189, %v172
    %v191 = vpop.permute.xlu0 %190
    %vm193 = vcmask 261120
    %v195 = vsel %vm193, %v165, 0
    %v198 = vsel %vm193, %v166, 0
    %v201 = vsel %vm193, %v167, 0
    %v204 = vsel %vm193, %v168, 0
    %206 = vmatpush.msra.mxu0 0.0
    %207 = vmatpush.msra.mxu0 0.0
    %208 = vmatpush.msra.mxu0 0.0
    %209 = vmatpush.msra.mxu0 0.0
    %210 = vmatpush.msra.mxu0 0.0
    %211 = vmatpush.msra.mxu0 0.0
    %212 = vmatpush.msra.mxu0 0.0
    %213 = vmatpush.msra.mxu0 0.0
    %214 = vmatpush.msra.mxu0 0.0
    %215 = vmatpush.msra.mxu0 0.0
    %216 = vmatpush.msra.mxu0 0.0
    %217 = vmatpush.msra.mxu0 0.0
    %218 = vmatpush.msra.mxu0 %v164
    %219 = vmatpush.msra.mxu0 %v163
    %220 = vmatpush.msra.mxu0 %v162
    %221 = vmatpush.msra.mxu0 %v161
    %222 = vmatmul.f32.gmra.mxu0 %v195
    %v223 = vpop.f32.mrf.mxu0
    %v224 = vadd.f32 %v176, %v223
    %225 = vmatmul.f32.gmra.mxu0 %v198
    %v226 = vpop.f32.mrf.mxu0
    %v227 = vadd.f32 %v181, %v226
    %228 = vmatmul.f32.gmra.mxu0 %v201
    %v229 = vpop.f32.mrf.mxu0
    %v230 = vadd.f32 %v186, %v229
    %231 = vmatmul.f32.gmra.mxu0 %v204
    %v232 = vpop.f32.mrf.mxu0
    %v233 = vadd.f32 %v191, %v232
    %234 = vdwg.mxu0
    %v235 = vmax.f32 %v224, 0.0
    %v236 = vmax.f32 %v227, 0.0
    %v237 = vmax.f32 %v230, 0.0
    %v238 = vmax.f32 %v233, 0.0
    %v239 = vand.u32 2147483647, %v224
    %v240 = vand.u32 2147483647, %v227
    %v241 = vand.u32 2147483647, %v230
    %v242 = vand.u32 2147483647, %v233
    %v243 = vsub.f32 0.0, %v239
    %v244 = vsub.f32 0.0, %v240
    %v245 = vsub.f32 0.0, %v241
    %v246 = vsub.f32 0.0, %v242
    %v247 = vmul.f32 %v243, 1.442695
    %v248 = vpow.pop %v247
    %v249 = vmul.f32 %v244, 1.442695
    %v250 = vpow.pop %v249
    %v251 = vmul.f32 %v245, 1.442695
    %v252 = vpow.pop %v251
    %v253 = vmul.f32 %v246, 1.442695
    %v254 = vpow.pop %v253
    %v255 = vadd.f32 %v248, 1.0
    %v256 = vlog2.pop %v255
    %v257 = vmul.f32 %v256, 0.6931472
    %v258 = vmul.f32 -0.5, %v248
    %v259 = vadd.f32 %v258, 1.0
    %v260 = vmul.f32 %v259, %v248
    %v261 = vand.u32 2147483647, %v248
    %vm262 = vcmp.lt.f32.partialorder %v261, 0.0004427343
    %v263 = vsel %vm262, %v260, %v257
    %v264 = vadd.f32 %v250, 1.0
    %v265 = vlog2.pop %v264
    %v266 = vmul.f32 %v265, 0.6931472
    %v267 = vmul.f32 -0.5, %v250
    %v268 = vadd.f32 %v267, 1.0
    %v269 = vmul.f32 %v268, %v250
    %v270 = vand.u32 2147483647, %v250
    %vm271 = vcmp.lt.f32.partialorder %v270, 0.0004427343
    %v272 = vsel %vm271, %v269, %v266
    %v273 = vadd.f32 %v252, 1.0
    %v274 = vlog2.pop %v273
    %v275 = vmul.f32 %v274, 0.6931472
    %v276 = vmul.f32 -0.5, %v252
    %v277 = vadd.f32 %v276, 1.0
    %v278 = vmul.f32 %v277, %v252
    %v279 = vand.u32 2147483647, %v252
    %vm280 = vcmp.lt.f32.partialorder %v279, 0.0004427343
    %v281 = vsel %vm280, %v278, %v275
    %v282 = vadd.f32 %v254, 1.0
    %v283 = vlog2.pop %v282
    %v284 = vmul.f32 %v283, 0.6931472
    %v285 = vmul.f32 -0.5, %v254
    %v286 = vadd.f32 %v285, 1.0
    %v287 = vmul.f32 %v286, %v254
    %v288 = vand.u32 2147483647, %v254
    %vm289 = vcmp.lt.f32.partialorder %v288, 0.0004427343
    %v290 = vsel %vm289, %v287, %v284
    %v291 = vadd.f32 %v235, %v263
    %v292 = vadd.f32 %v236, %v272
    %v293 = vadd.f32 %v237, %v281
    %v294 = vadd.f32 %v238, %v290
    %v295 = vld [vmem:[%s5] sm:$0xff]
    %v296 = vld [vmem:[%s6] sm:$0xff]
    %298 = vset.pattern.permute.xlu0 0
    %299 = vperm.xlu0 %298, %v296
    %v300 = vpop.permute.xlu0 %299
    %v303 = vsel %vm193, %v295, 0
    %305 = vmatpush.msra.mxu0 0.0
    %306 = vmatpush.msra.mxu0 0.0
    %307 = vmatpush.msra.mxu0 0.0
    %308 = vmatpush.msra.mxu0 0.0
    %309 = vmatpush.msra.mxu0 0.0
    %310 = vmatpush.msra.mxu0 0.0
    %311 = vmatpush.msra.mxu0 0.0
    %312 = vmatpush.msra.mxu0 0.0
    %313 = vmatpush.msra.mxu0 0.0
    %314 = vmatpush.msra.mxu0 0.0
    %315 = vmatpush.msra.mxu0 0.0
    %316 = vmatpush.msra.mxu0 0.0
    %317 = vmatpush.msra.mxu0 %v294
    %318 = vmatpush.msra.mxu0 %v293
    %319 = vmatpush.msra.mxu0 %v292
    %320 = vmatpush.msra.mxu0 %v291
    %321 = vmatmul.f32.gmra.mxu0 %v303
    %v322 = vpop.f32.mrf.mxu0
    %v323 = vadd.f32 %v300, %v322
    %324 = vdwg.mxu0
    %325 = vst.msk [vmem:[#allocation2] sm:$0xff] %vm57, %v323
    // Predicated region
    $region30: #{tpu_custom_call.1} parent=1 // pred_check
      _
    $region31: #{tpu_custom_call.1} parent=1 // pred_check_branch
      %327 = sbr.rel (0) target = $region33
    $region32: #{tpu_custom_call.1} parent=1 // pred_region
      %329 = vsyncadd [#allocation3], 0
      %s331 = sshll.u32 [#allocation2], 4
      %s332 = int_to_ptr.vmem [resolvable:$true] %s331
      %s333 = sshll.u32 %s7, 4
      %s334 = int_to_ptr.hbm [resolvable:$true] %s333
      %336 = dma.vmem_to_hbm [thread:$0]  %s332, 128, %s334, [#allocation3]
    $region33: #{tpu_custom_call.1} parent=1 // pred_fallthru
      _
    // Predicated region
    $region34: #{tpu_custom_call.1} parent=1 // pred_check
      _
    $region35: #{tpu_custom_call.1} parent=1 // pred_check_branch
      %338 = sbr.rel (0) target = $region37
    $region36: #{tpu_custom_call.1} parent=1 // pred_region
      %340 = dma.done [#allocation3], 128
    $region37: #{tpu_custom_call.1} parent=1 // pred_fallthru
      _
    %341 = vsyncpa [#allocation3], 1

</llo_original>
